<compile_context>
chip_gen: v7x
topology: tpu7x:2x2x1
jax: 0.10.0
libtpu: 0.0.40
codegen_flags: <defaults>
</compile_context>

<pallas_src>
import functools

import jax
import jax.numpy as jnp
from jax import lax
from jax.experimental import pallas as pl
from jax.experimental.pallas import tpu as pltpu


def _round_up(x, m):
    return ((x + m - 1) // m) * m


# --------------------- Pass 1: encode + row-normalize ---------------------
def encode_kernel(zc_ref, w1_ref, b1_ref, w2_ref, b2_ref, z_ref, nz_ref):
    f32 = jnp.float32
    zc = zc_ref[...]                                    # (tb, K1)
    # torch: z = cat(z_p, z_r) @ W1.T + b1 ; z = z @ W2.T + b2
    h = jnp.dot(zc, w1_ref[...], preferred_element_type=f32) + b1_ref[...]
    z = jnp.dot(h, w2_ref[...], preferred_element_type=f32) + b2_ref[...]
    # norm_z = z / (||z||_2 + eps): reciprocal on the (tb, 1) vector, then a
    # VPU multiply on the big tensor — exact same eps semantics as PyTorch.
    eps = jnp.float32(1e-8)
    inv = 1.0 / (jnp.sqrt(jnp.sum(z * z, axis=1, keepdims=True)) + eps)
    z_ref[...] = z
    nz_ref[...] = z * inv


# --------------------- Pass 2: recon = norm_z @ norm_z.T ------------------
def gram_kernel(nzi_ref, nzj_ref, recon_ref):
    # A @ B.T via dot_general contracting both last axes — no transposed copy
    # of the j tile needs to be materialized.
    recon_ref[...] = lax.dot_general(
        nzi_ref[...], nzj_ref[...],
        dimension_numbers=(((1,), (1,)), ((), ())),
        preferred_element_type=jnp.float32).astype(recon_ref.dtype)


@functools.partial(jax.jit, static_argnames=("tile_b", "bf16_recon"))
def sencoder_forward(z_p, z_r, params, *, tile_b=512, bf16_recon=False):
    """Pallas implementation of SEncoder.forward -> (recon_x, z)."""
    B, D = z_p.shape
    w1, b1, w2, b2 = params["w1"], params["b1"], params["w2"], params["b2"]
    L = w2.shape[0]

    # PyTorch Linear stores W as (out, in); kernels compute x @ W.T.
    w1_t = w1.T                                   # (2D, D)
    w2_t = w2.T                                   # (D, L)

    # Lane-dense padded dims (last dims -> multiples of 128).
    K1 = _round_up(2 * D, 128)                    # concat feature dim
    H = _round_up(D, 128)                         # hidden dim
    Lp = _round_up(L, 128)                        # latent dim
    # Effective row tile: never bigger than the 128-rounded batch, so small
    # batches stay a single-tile grid and padded rows/tiles are minimized.
    tb = min(tile_b, _round_up(B, 128))
    Bp = _round_up(B, tb)
    n_tiles = Bp // tb

    # Zero padding keeps real outputs exact: padded weight/bias COLUMNS are 0,
    # so padded z columns are 0 and don't affect norms or the Gram matrix.
    # Padded ROWS are nonzero (bias) but get sliced off below.
    zc = jnp.concatenate([z_p, z_r], axis=1).astype(jnp.float32)
    zc = jnp.pad(zc, ((0, Bp - B), (0, K1 - 2 * D)))
    w1p = jnp.pad(w1_t.astype(jnp.float32), ((0, K1 - 2 * D), (0, H - D)))
    b1p = jnp.pad(b1.astype(jnp.float32).reshape(1, D), ((0, 0), (0, H - D)))
    w2p = jnp.pad(w2_t.astype(jnp.float32), ((0, H - D), (0, Lp - L)))
    b2p = jnp.pad(b2.astype(jnp.float32).reshape(1, L), ((0, 0), (0, Lp - L)))

    # ---- Pass 1: each row tile encoded + normalized exactly once. ----
    # VMEM: double-buffered zc stream, two double-buffered (tb, Lp) outputs,
    # resident (double-buffered) weights/biases; 2x headroom, >=4 MiB.
    vmem1 = 4 * (2 * tb * K1 + 4 * tb * Lp
                 + 2 * (K1 * H + H * Lp + H + Lp))
    vmem1 = int(min(max(2 * vmem1, 4 << 20), 64 << 20))
    z_pad, nz = pl.pallas_call(
        encode_kernel,
        out_shape=(
            jax.ShapeDtypeStruct((Bp, Lp), jnp.float32),   # z       (padded)
            jax.ShapeDtypeStruct((Bp, Lp), jnp.float32),   # norm_z  (padded)
        ),
        grid=(n_tiles,),
        in_specs=[
            pl.BlockSpec((tb, K1), lambda i: (i, 0)),      # zc row tile
            pl.BlockSpec((K1, H), lambda i: (0, 0)),       # W1.T
            pl.BlockSpec((1, H), lambda i: (0, 0)),        # b1
            pl.BlockSpec((H, Lp), lambda i: (0, 0)),       # W2.T
            pl.BlockSpec((1, Lp), lambda i: (0, 0)),       # b2
        ],
        out_specs=(
            pl.BlockSpec((tb, Lp), lambda i: (i, 0)),      # z row tile
            pl.BlockSpec((tb, Lp), lambda i: (i, 0)),      # nz row tile
        ),
        compiler_params=pltpu.CompilerParams(
            dimension_semantics=("parallel",),
            vmem_limit_bytes=vmem1,
        ),
    )(zc, w1p, b1p, w2p, b2p)

    # ---- Pass 2: Gram over (i, j) tiles; no revisited output, both axes
    #      parallel (v7x megacore shards the tile grid). ----
    recon_dtype = jnp.bfloat16 if bf16_recon else jnp.float32
    out_bytes = 2 if bf16_recon else 4
    vmem2 = out_bytes * (2 * tb * tb) + 4 * (4 * tb * Lp)
    vmem2 = int(min(max(2 * vmem2, 4 << 20), 64 << 20))
    recon_pad = pl.pallas_call(
        gram_kernel,
        out_shape=jax.ShapeDtypeStruct((Bp, Bp), recon_dtype),
        grid=(n_tiles, n_tiles),
        in_specs=[
            pl.BlockSpec((tb, Lp), lambda i, j: (i, 0)),   # nz rows (i)
            pl.BlockSpec((tb, Lp), lambda i, j: (j, 0)),   # nz rows (j)
        ],
        out_specs=pl.BlockSpec((tb, tb), lambda i, j: (i, j)),
        compiler_params=pltpu.CompilerParams(
            dimension_semantics=("parallel", "parallel"),
            vmem_limit_bytes=vmem2,
        ),
    )(nz, nz)

    return recon_pad[:B, :B], z_pad[:B, :L]


def init_params(input_dim, latent_dim):
    """Deterministic synthetic parameters matching nn.Linear shapes."""
    k = jax.random.PRNGKey(42)
    k1, k2, k3, k4 = jax.random.split(k, 4)
    s1 = 1.0 / jnp.sqrt(2.0 * input_dim)
    s2 = 1.0 / jnp.sqrt(1.0 * input_dim)
    return {
        # fc_decode: Linear(2*input_dim -> input_dim)
        "w1": jax.random.uniform(k1, (input_dim, 2 * input_dim),
                                 jnp.float32, -s1, s1),
        "b1": jax.random.uniform(k2, (input_dim,), jnp.float32, -s1, s1),
        # fc_decode_last: Linear(input_dim -> latent_dim)
        "w2": jax.random.uniform(k3, (latent_dim, input_dim),
                                 jnp.float32, -s2, s2),
        "b2": jax.random.uniform(k4, (latent_dim,), jnp.float32, -s2, s2),
    }


def reference_forward(z_p, z_r, params):
    """Plain-JAX reference mirroring the PyTorch module exactly."""
    z_cat = jnp.concatenate([z_p, z_r], axis=1)
    h = z_cat @ params["w1"].T + params["b1"]
    z = h @ params["w2"].T + params["b2"]
    norm_z = z / (jnp.linalg.norm(z, axis=1, keepdims=True) + 1e-8)
    recon = norm_z @ norm_z.T
    return recon, z


# TODO(synk): set_optimizer (torch.optim.Adam) is a training utility, not part
# of the forward pass, so it has no Pallas equivalent here.

if __name__ == "__main__":
    B, input_dim, latent_dim = 8, 16, 32

    key = jax.random.PRNGKey(0)
    kp, kr = jax.random.split(key)
    z_p = jax.random.normal(kp, (B, input_dim), jnp.float32)
    z_r = jax.random.normal(kr, (B, input_dim), jnp.float32)

    params = init_params(input_dim, latent_dim)

    recon, z = sencoder_forward(z_p, z_r, params)
    jax.block_until_ready((recon, z))

    recon_ref, z_ref = reference_forward(z_p, z_r, params)
    assert recon.shape == (B, B) and z.shape == (B, latent_dim)
    assert jnp.allclose(z, z_ref, atol=1e-5, rtol=1e-5)
    assert jnp.allclose(recon, recon_ref, atol=1e-5, rtol=1e-5)

    print("KERNEL_OK")
</pallas_src>

<mosaic_0001>
module attributes {stable_mosaic.version = 11 : i64} {
  func.func @gram_kernel(%arg0: i32, %arg1: i32, %arg2: memref<128x128xf32, #tpu.memory_space<vmem>>, %arg3: memref<128x128xf32, #tpu.memory_space<vmem>>, %arg4: memref<128x128xf32, #tpu.memory_space<vmem>>) attributes {dimension_semantics = [#tpu.dimension_semantics<parallel>, #tpu.dimension_semantics<parallel>], iteration_bounds = array<i64: 1, 1>, scalar_prefetch = 0 : i64, scratch_operands = 0 : i64, tpu.core_type = #tpu.core_type<tc>, window_params = [{transform_indices = @transform_0, window_bounds = array<i64: 128, 128>}, {transform_indices = @transform_1, window_bounds = array<i64: 128, 128>}, {transform_indices = @transform_2, window_bounds = array<i64: 128, 128>}]} {
    %c0 = arith.constant 0 : index
    %c0_0 = arith.constant 0 : index
    %0 = vector.load %arg2[%c0, %c0_0] : memref<128x128xf32, #tpu.memory_space<vmem>>, vector<128x128xf32>
    %c0_1 = arith.constant 0 : index
    %c0_2 = arith.constant 0 : index
    %1 = vector.load %arg3[%c0_1, %c0_2] : memref<128x128xf32, #tpu.memory_space<vmem>>, vector<128x128xf32>
    %cst = arith.constant dense<0.000000e+00> : vector<128x128xf32>
    %2 = tpu.matmul %0, %1, %cst {dimension_numbers = #tpu.dot_dimension_numbers<[1], [1], [0], [0], [0, 0, 1, 0], [], []>} : vector<128x128xf32>, vector<128x128xf32>, vector<128x128xf32> -> vector<128x128xf32>
    %c0_3 = arith.constant 0 : index
    %c0_4 = arith.constant 0 : index
    %3 = vector.load %arg4[%c0_3, %c0_4] : memref<128x128xf32, #tpu.memory_space<vmem>>, vector<128x128xf32>
    tpu.vector_store %arg4[%c0_3, %c0_4], %2 {strides = array<i32>} : memref<128x128xf32, #tpu.memory_space<vmem>>, vector<128x128xf32>,
    return
  }
  func.func @transform_0(%arg0: i32, %arg1: i32) -> (i32, i32) {
    %c0_i32 = arith.constant 0 : i32
    %c0_i32_0 = arith.constant 0 : i32
    return %arg0, %c0_i32 : i32, i32
  }
  func.func @transform_1(%arg0: i32, %arg1: i32) -> (i32, i32) {
    %c0_i32 = arith.constant 0 : i32
    %c0_i32_0 = arith.constant 0 : i32
    return %arg1, %c0_i32 : i32, i32
  }
  func.func @transform_2(%arg0: i32, %arg1: i32) -> (i32, i32) {
    %c0_i32 = arith.constant 0 : i32
    return %arg0, %arg1 : i32, i32
  }
}

module attributes {stable_mosaic.version = 11 : i64} {
  func.func @encode_kernel(%arg0: i32, %arg1: memref<128x128xf32, #tpu.memory_space<vmem>>, %arg2: memref<128x128xf32, #tpu.memory_space<vmem>>, %arg3: memref<1x128xf32, #tpu.memory_space<vmem>>, %arg4: memref<128x128xf32, #tpu.memory_space<vmem>>, %arg5: memref<1x128xf32, #tpu.memory_space<vmem>>, %arg6: memref<128x128xf32, #tpu.memory_space<vmem>>, %arg7: memref<128x128xf32, #tpu.memory_space<vmem>>) attributes {dimension_semantics = [#tpu.dimension_semantics<parallel>], iteration_bounds = array<i64: 1>, scalar_prefetch = 0 : i64, scratch_operands = 0 : i64, tpu.core_type = #tpu.core_type<tc>, window_params = [{transform_indices = @transform_0, window_bounds = array<i64: 128, 128>}, {pipeline_mode = #tpu.pipeline_mode<synchronous>, transform_indices = @transform_1, window_bounds = array<i64: 128, 128>}, {pipeline_mode = #tpu.pipeline_mode<synchronous>, transform_indices = @transform_2, window_bounds = array<i64: 1, 128>}, {pipeline_mode = #tpu.pipeline_mode<synchronous>, transform_indices = @transform_3, window_bounds = array<i64: 128, 128>}, {pipeline_mode = #tpu.pipeline_mode<synchronous>, transform_indices = @transform_4, window_bounds = array<i64: 1, 128>}, {transform_indices = @transform_5, window_bounds = array<i64: 128, 128>}, {transform_indices = @transform_6, window_bounds = array<i64: 128, 128>}]} {
    %c0 = arith.constant 0 : index
    %c0_0 = arith.constant 0 : index
    %0 = vector.load %arg1[%c0, %c0_0] : memref<128x128xf32, #tpu.memory_space<vmem>>, vector<128x128xf32>
    %c0_1 = arith.constant 0 : index
    %c0_2 = arith.constant 0 : index
    %1 = vector.load %arg2[%c0_1, %c0_2] : memref<128x128xf32, #tpu.memory_space<vmem>>, vector<128x128xf32>
    %cst = arith.constant dense<0.000000e+00> : vector<128x128xf32>
    %2 = tpu.matmul %0, %1, %cst {dimension_numbers = #tpu.dot_dimension_numbers<[1], [0], [0], [1], [0, 0, 1, 1], [], []>} : vector<128x128xf32>, vector<128x128xf32>, vector<128x128xf32> -> vector<128x128xf32>
    %c0_3 = arith.constant 0 : index
    %c0_4 = arith.constant 0 : index
    %3 = vector.load %arg3[%c0_3, %c0_4] : memref<1x128xf32, #tpu.memory_space<vmem>>, vector<1x128xf32>
    %4 = vector.broadcast %3 : vector<1x128xf32> to vector<128x128xf32>
    %5 = arith.addf %2, %4 : vector<128x128xf32>
    %c0_5 = arith.constant 0 : index
    %c0_6 = arith.constant 0 : index
    %6 = vector.load %arg4[%c0_5, %c0_6] : memref<128x128xf32, #tpu.memory_space<vmem>>, vector<128x128xf32>
    %cst_7 = arith.constant dense<0.000000e+00> : vector<128x128xf32>
    %7 = tpu.matmul %5, %6, %cst_7 {dimension_numbers = #tpu.dot_dimension_numbers<[1], [0], [0], [1], [0, 0, 1, 1], [], []>} : vector<128x128xf32>, vector<128x128xf32>, vector<128x128xf32> -> vector<128x128xf32>
    %c0_8 = arith.constant 0 : index
    %c0_9 = arith.constant 0 : index
    %8 = vector.load %arg5[%c0_8, %c0_9] : memref<1x128xf32, #tpu.memory_space<vmem>>, vector<1x128xf32>
    %9 = vector.broadcast %8 : vector<1x128xf32> to vector<128x128xf32>
    %10 = arith.addf %7, %9 : vector<128x128xf32>
    %11 = arith.mulf %10, %10 : vector<128x128xf32>
    %cst_10 = arith.constant dense<0.000000e+00> : vector<128xf32>
    %12 = vector.multi_reduction <add>, %11, %cst_10 [1] : vector<128x128xf32> to vector<128xf32>
    %13 = vector.shape_cast %12 : vector<128xf32> to vector<128x1xf32>
    %14 = math.sqrt %13 : vector<128x1xf32>
    %cst_11 = arith.constant 9.99999993E-9 : f32
    %15 = vector.broadcast %cst_11 : f32 to vector<128x1xf32>
    %16 = arith.addf %14, %15 : vector<128x1xf32>
    %cst_12 = arith.constant 1.000000e+00 : f32
    %17 = vector.broadcast %cst_12 : f32 to vector<128x1xf32>
    %18 = arith.divf %17, %16 : vector<128x1xf32>
    %c0_13 = arith.constant 0 : index
    %c0_14 = arith.constant 0 : index
    %19 = vector.load %arg6[%c0_13, %c0_14] : memref<128x128xf32, #tpu.memory_space<vmem>>, vector<128x128xf32>
    tpu.vector_store %arg6[%c0_13, %c0_14], %10 {strides = array<i32>} : memref<128x128xf32, #tpu.memory_space<vmem>>, vector<128x128xf32>,
    %20 = vector.broadcast %18 : vector<128x1xf32> to vector<128x128xf32>
    %21 = arith.mulf %10, %20 : vector<128x128xf32>
    %c0_15 = arith.constant 0 : index
    %c0_16 = arith.constant 0 : index
    %22 = vector.load %arg7[%c0_15, %c0_16] : memref<128x128xf32, #tpu.memory_space<vmem>>, vector<128x128xf32>
    tpu.vector_store %arg7[%c0_15, %c0_16], %21 {strides = array<i32>} : memref<128x128xf32, #tpu.memory_space<vmem>>, vector<128x128xf32>,
    return
  }
  func.func @transform_0(%arg0: i32) -> (i32, i32) {
    %c0_i32 = arith.constant 0 : i32
    %c0_i32_0 = arith.constant 0 : i32
    return %arg0, %c0_i32 : i32, i32
  }
  func.func @transform_1(%arg0: i32) -> (i32, i32) {
    %c0_i32 = arith.constant 0 : i32
    %c0_i32_0 = arith.constant 0 : i32
    %c0_i32_1 = arith.constant 0 : i32
    return %c0_i32, %c0_i32_0 : i32, i32
  }
  func.func @transform_2(%arg0: i32) -> (i32, i32) {
    %c0_i32 = arith.constant 0 : i32
    %c0_i32_0 = arith.constant 0 : i32
    %c0_i32_1 = arith.constant 0 : i32
    return %c0_i32, %c0_i32_0 : i32, i32
  }
  func.func @transform_3(%arg0: i32) -> (i32, i32) {
    %c0_i32 = arith.constant 0 : i32
    %c0_i32_0 = arith.constant 0 : i32
    %c0_i32_1 = arith.constant 0 : i32
    return %c0_i32, %c0_i32_0 : i32, i32
  }
  func.func @transform_4(%arg0: i32) -> (i32, i32) {
    %c0_i32 = arith.constant 0 : i32
    %c0_i32_0 = arith.constant 0 : i32
    %c0_i32_1 = arith.constant 0 : i32
    return %c0_i32, %c0_i32_0 : i32, i32
  }
  func.func @transform_5(%arg0: i32) -> (i32, i32) {
    %c0_i32 = arith.constant 0 : i32
    %c0_i32_0 = arith.constant 0 : i32
    return %arg0, %c0_i32 : i32, i32
  }
  func.func @transform_6(%arg0: i32) -> (i32, i32) {
    %c0_i32 = arith.constant 0 : i32
    %c0_i32_0 = arith.constant 0 : i32
    return %arg0, %c0_i32 : i32, i32
  }
}

</mosaic_0001>

<llo_original>
// kernel: sencoder_forward.3
$region0: #{sencoder_forward.3}
  #allocation0 [shape = 'u32[]', space=smem, size = 0x4, offset = 0x4, fixed_abs, tag = 'smem constant byte address 0x4 - core index']
  #allocation1 [shape = 'u32[144,128]{1,0:T(1,128)}', space=vmem, size = 0x12000, scoped, tag = 'internal scratch']
  %s0 = inlined_call_operand.vmem [shape: f32[128,128], index: 0, kind: input, shape index: {}, may-alias: {0,1}]
  %s1 = inlined_call_operand.vmem [shape: f32[128,128], index: 1, kind: input, shape index: {}, may-alias: {0,1}]
  %s2 = inlined_call_operand.vmem [shape: f32[128,128], index: 2, kind: output, shape index: {}]
  %s3 = sld [smem:[#allocation0]]
  $region18: #{sencoder_forward.3} parent=0
    _
  %s5 = ssub.s32 1, %s3
  %s6 = scalar_select 0, %s5, %s3
  // Predicated region
  $region2: #{sencoder_forward.3} parent=0 // pred_check
    _
  $region3: #{sencoder_forward.3} parent=0 // pred_check_branch
    %8 = sbr.rel (0) target = $region5
  $region4: #{sencoder_forward.3} parent=0 // pred_region
    _
  $region5: #{sencoder_forward.3} parent=0 // pred_fallthru
    _
  // Predicated region
  $region6: #{sencoder_forward.3} parent=0 // pred_check
    _
  $region7: #{sencoder_forward.3} parent=0 // pred_check_branch
    %10 = sbr.rel (0) target = $region9
  $region8: #{sencoder_forward.3} parent=0 // pred_region
    _
  $region9: #{sencoder_forward.3} parent=0 // pred_fallthru
    _
  %v11 = vld [vmem:[%s0] sm:$0xff]
  %v12 = vld [vmem:[%s0 + $0x8] sm:$0xff]
  %v13 = vld [vmem:[%s0 + $0x10] sm:$0xff]
  %v14 = vld [vmem:[%s0 + $0x18] sm:$0xff]
  %v15 = vld [vmem:[%s0 + $0x20] sm:$0xff]
  %v16 = vld [vmem:[%s0 + $0x28] sm:$0xff]
  %v17 = vld [vmem:[%s0 + $0x30] sm:$0xff]
  %v18 = vld [vmem:[%s0 + $0x38] sm:$0xff]
  %v19 = vld [vmem:[%s0 + $0x40] sm:$0xff]
  %v20 = vld [vmem:[%s0 + $0x48] sm:$0xff]
  %v21 = vld [vmem:[%s0 + $0x50] sm:$0xff]
  %v22 = vld [vmem:[%s0 + $0x58] sm:$0xff]
  %v23 = vld [vmem:[%s0 + $0x60] sm:$0xff]
  %v24 = vld [vmem:[%s0 + $0x68] sm:$0xff]
  %v25 = vld [vmem:[%s0 + $0x70] sm:$0xff]
  %v26 = vld [vmem:[%s0 + $0x78] sm:$0xff]
  %v27 = vld [vmem:[%s1] sm:$0xff]
  %v28 = vld [vmem:[%s1 + $0x8] sm:$0xff]
  %v29 = vld [vmem:[%s1 + $0x10] sm:$0xff]
  %v30 = vld [vmem:[%s1 + $0x18] sm:$0xff]
  %v31 = vld [vmem:[%s1 + $0x20] sm:$0xff]
  %v32 = vld [vmem:[%s1 + $0x28] sm:$0xff]
  %v33 = vld [vmem:[%s1 + $0x30] sm:$0xff]
  %v34 = vld [vmem:[%s1 + $0x38] sm:$0xff]
  %v35 = vld [vmem:[%s1 + $0x40] sm:$0xff]
  %v36 = vld [vmem:[%s1 + $0x48] sm:$0xff]
  %v37 = vld [vmem:[%s1 + $0x50] sm:$0xff]
  %v38 = vld [vmem:[%s1 + $0x58] sm:$0xff]
  %v39 = vld [vmem:[%s1 + $0x60] sm:$0xff]
  %v40 = vld [vmem:[%s1 + $0x68] sm:$0xff]
  %v41 = vld [vmem:[%s1 + $0x70] sm:$0xff]
  %v42 = vld [vmem:[%s1 + $0x78] sm:$0xff]
  %43 = vmatprep.subr.mxu0 0.0
  %44 = vmatpush1.xpose.msra.mxu0 %v27
  %45 = vmatprep.subr.mxu0 0.0
  %46 = vmatpush1.xpose.msra.mxu0 %v28
  %47 = vmatprep.subr.mxu0 0.0
  %48 = vmatpush1.xpose.msra.mxu0 %v29
  %49 = vmatprep.subr.mxu0 0.0
  %50 = vmatpush1.xpose.msra.mxu0 %v30
  %51 = vmatprep.subr.mxu0 0.0
  %52 = vmatpush1.xpose.msra.mxu0 %v31
  %53 = vmatprep.subr.mxu0 0.0
  %54 = vmatpush1.xpose.msra.mxu0 %v32
  %55 = vmatprep.subr.mxu0 0.0
  %56 = vmatpush1.xpose.msra.mxu0 %v33
  %57 = vmatprep.subr.mxu0 0.0
  %58 = vmatpush1.xpose.msra.mxu0 %v34
  %59 = vmatprep.subr.mxu0 0.0
  %60 = vmatpush1.xpose.msra.mxu0 %v35
  %61 = vmatprep.subr.mxu0 0.0
  %62 = vmatpush1.xpose.msra.mxu0 %v36
  %63 = vmatprep.subr.mxu0 0.0
  %64 = vmatpush1.xpose.msra.mxu0 %v37
  %65 = vmatprep.subr.mxu0 0.0
  %66 = vmatpush1.xpose.msra.mxu0 %v38
  %67 = vmatprep.subr.mxu0 0.0
  %68 = vmatpush1.xpose.msra.mxu0 %v39
  %69 = vmatprep.subr.mxu0 0.0
  %70 = vmatpush1.xpose.msra.mxu0 %v40
  %71 = vmatprep.subr.mxu0 0.0
  %72 = vmatpush1.xpose.msra.mxu0 %v41
  %73 = vmatprep.subr.mxu0 0.0
  %74 = vmatpush1.xpose.msra.mxu0 %v42
  %75 = vmatprep.subr.mxu0 0.0
  %76 = vmatpush1.xpose.msra.mxu0 0.0
  %77 = vmatprep.subr.mxu0 0.0
  %78 = vmatpush1.xpose.msra.mxu0 0.0
  %79 = vmatprep.subr.mxu0 0.0
  %80 = vmatpush1.xpose.msra.mxu0 0.0
  %81 = vmatprep.subr.mxu0 0.0
  %82 = vmatpush1.xpose.msra.mxu0 0.0
  %83 = vmatprep.subr.mxu0 0.0
  %84 = vmatpush1.xpose.msra.mxu0 0.0
  %85 = vmatprep.subr.mxu0 0.0
  %86 = vmatpush1.xpose.msra.mxu0 0.0
  %87 = vmatprep.subr.mxu0 0.0
  %88 = vmatpush1.xpose.msra.mxu0 0.0
  %89 = vmatprep.subr.mxu0 0.0
  %90 = vmatpush1.xpose.msra.mxu0 0.0
  %91 = vmatprep.subr.mxu0 0.0
  %92 = vmatpush1.xpose.msra.mxu0 0.0
  %93 = vmatprep.subr.mxu0 0.0
  %94 = vmatpush1.xpose.msra.mxu0 0.0
  %95 = vmatprep.subr.mxu0 0.0
  %96 = vmatpush1.xpose.msra.mxu0 0.0
  %97 = vmatprep.subr.mxu0 0.0
  %98 = vmatpush1.xpose.msra.mxu0 0.0
  %99 = vmatprep.subr.mxu0 0.0
  %100 = vmatpush1.xpose.msra.mxu0 0.0
  %101 = vmatprep.subr.mxu0 0.0
  %102 = vmatpush1.xpose.msra.mxu0 0.0
  %103 = vmatprep.subr.mxu0 0.0
  %104 = vmatpush1.xpose.msra.mxu0 0.0
  %105 = vmatprep.subr.mxu0 0.0
  %106 = vmatpush1.xpose.msra.mxu0 0.0
  %107 = vmatprep.mubr.f32.mxu0 0.0
  %108 = vmatmul.mubr.f32.gmra.mrb[0].mxu0 %v11
  %v109 = vpop.f32.mrb[0].mxu0
  %v110 = vadd.f32 0.0, %v109
  %v111 = vpop.f32.mrb[0].mxu0
  %112 = vmatprep.mubr.f32.mxu0 0.0
  %113 = vmatmul.mubr.f32.gmra.mrb[0].mxu0 %v12
  %v114 = vpop.f32.mrb[0].mxu0
  %v115 = vadd.f32 0.0, %v114
  %v116 = vpop.f32.mrb[0].mxu0
  %117 = vmatprep.mubr.f32.mxu0 0.0
  %118 = vmatmul.mubr.f32.gmra.mrb[0].mxu0 %v13
  %v119 = vpop.f32.mrb[0].mxu0
  %v120 = vadd.f32 0.0, %v119
  %v121 = vpop.f32.mrb[0].mxu0
  %122 = vmatprep.mubr.f32.mxu0 0.0
  %123 = vmatmul.mubr.f32.gmra.mrb[0].mxu0 %v14
  %v124 = vpop.f32.mrb[0].mxu0
  %v125 = vadd.f32 0.0, %v124
  %v126 = vpop.f32.mrb[0].mxu0
  %127 = vmatprep.mubr.f32.mxu0 0.0
  %128 = vmatmul.mubr.f32.gmra.mrb[0].mxu0 %v15
  %v129 = vpop.f32.mrb[0].mxu0
  %v130 = vadd.f32 0.0, %v129
  %v131 = vpop.f32.mrb[0].mxu0
  %132 = vmatprep.mubr.f32.mxu0 0.0
  %133 = vmatmul.mubr.f32.gmra.mrb[0].mxu0 %v16
  %v134 = vpop.f32.mrb[0].mxu0
  %v135 = vadd.f32 0.0, %v134
  %v136 = vpop.f32.mrb[0].mxu0
  %137 = vmatprep.mubr.f32.mxu0 0.0
  %138 = vmatmul.mubr.f32.gmra.mrb[0].mxu0 %v17
  %v139 = vpop.f32.mrb[0].mxu0
  %v140 = vadd.f32 0.0, %v139
  %v141 = vpop.f32.mrb[0].mxu0
  %142 = vmatprep.mubr.f32.mxu0 0.0
  %143 = vmatmul.mubr.f32.gmra.mrb[0].mxu0 %v18
  %v144 = vpop.f32.mrb[0].mxu0
  %v145 = vadd.f32 0.0, %v144
  %v146 = vpop.f32.mrb[0].mxu0
  %147 = vmatprep.mubr.f32.mxu0 0.0
  %148 = vmatmul.mubr.f32.gmra.mrb[0].mxu0 %v19
  %v149 = vpop.f32.mrb[0].mxu0
  %v150 = vadd.f32 0.0, %v149
  %v151 = vpop.f32.mrb[0].mxu0
  %152 = vmatprep.mubr.f32.mxu0 0.0
  %153 = vmatmul.mubr.f32.gmra.mrb[0].mxu0 %v20
  %v154 = vpop.f32.mrb[0].mxu0
  %v155 = vadd.f32 0.0, %v154
  %v156 = vpop.f32.mrb[0].mxu0
  %157 = vmatprep.mubr.f32.mxu0 0.0
  %158 = vmatmul.mubr.f32.gmra.mrb[0].mxu0 %v21
  %v159 = vpop.f32.mrb[0].mxu0
  %v160 = vadd.f32 0.0, %v159
  %v161 = vpop.f32.mrb[0].mxu0
  %162 = vmatprep.mubr.f32.mxu0 0.0
  %163 = vmatmul.mubr.f32.gmra.mrb[0].mxu0 %v22
  %v164 = vpop.f32.mrb[0].mxu0
  %v165 = vadd.f32 0.0, %v164
  %v166 = vpop.f32.mrb[0].mxu0
  %167 = vmatprep.mubr.f32.mxu0 0.0
  %168 = vmatmul.mubr.f32.gmra.mrb[0].mxu0 %v23
  %v169 = vpop.f32.mrb[0].mxu0
  %v170 = vadd.f32 0.0, %v169
  %v171 = vpop.f32.mrb[0].mxu0
  %172 = vmatprep.mubr.f32.mxu0 0.0
  %173 = vmatmul.mubr.f32.gmra.mrb[0].mxu0 %v24
  %v174 = vpop.f32.mrb[0].mxu0
  %v175 = vadd.f32 0.0, %v174
  %v176 = vpop.f32.mrb[0].mxu0
  %177 = vmatprep.mubr.f32.mxu0 0.0
  %178 = vmatmul.mubr.f32.gmra.mrb[0].mxu0 %v25
  %v179 = vpop.f32.mrb[0].mxu0
  %v180 = vadd.f32 0.0, %v179
  %v181 = vpop.f32.mrb[0].mxu0
  %182 = vmatprep.mubr.f32.mxu0 0.0
  %183 = vmatmul.mubr.f32.gmra.mrb[0].mxu0 %v26
  %v184 = vpop.f32.mrb[0].mxu0
  %v185 = vadd.f32 0.0, %v184
  %v186 = vpop.f32.mrb[0].mxu0
  %187 = vdwg.mxu0
  %188 = vst [vmem:[%s2] sm:$0xff] %v110
  %189 = vst [vmem:[%s2 + $0x8] sm:$0xff] %v115
  %190 = vst [vmem:[%s2 + $0x10] sm:$0xff] %v120
  %191 = vst [vmem:[%s2 + $0x18] sm:$0xff] %v125
  %192 = vst [vmem:[%s2 + $0x20] sm:$0xff] %v130
  %193 = vst [vmem:[%s2 + $0x28] sm:$0xff] %v135
  %194 = vst [vmem:[%s2 + $0x30] sm:$0xff] %v140
  %195 = vst [vmem:[%s2 + $0x38] sm:$0xff] %v145
  %196 = vst [vmem:[%s2 + $0x40] sm:$0xff] %v150
  %197 = vst [vmem:[%s2 + $0x48] sm:$0xff] %v155
  %198 = vst [vmem:[%s2 + $0x50] sm:$0xff] %v160
  %199 = vst [vmem:[%s2 + $0x58] sm:$0xff] %v165
  %200 = vst [vmem:[%s2 + $0x60] sm:$0xff] %v170
  %201 = vst [vmem:[%s2 + $0x68] sm:$0xff] %v175
  %202 = vst [vmem:[%s2 + $0x70] sm:$0xff] %v180
  %203 = vst [vmem:[%s2 + $0x78] sm:$0xff] %v185
  // Predicated region
  $region10: #{sencoder_forward.3} parent=0 // pred_check
    _
  $region11: #{sencoder_forward.3} parent=0 // pred_check_branch
    %205 = sbr.rel (0) target = $region13
  $region12: #{sencoder_forward.3} parent=0 // pred_region
    _
  $region13: #{sencoder_forward.3} parent=0 // pred_fallthru
    _
  // Predicated region
  $region14: #{sencoder_forward.3} parent=0 // pred_check
    _
  $region15: #{sencoder_forward.3} parent=0 // pred_check_branch
    %207 = sbr.rel (0) target = $region17
  $region16: #{sencoder_forward.3} parent=0 // pred_region
    _
  $region17: #{sencoder_forward.3} parent=0 // pred_fallthru
    _

// kernel: sencoder_forward.2
$region0: #{sencoder_forward.2}
  #allocation0 [shape = 'u32[]', space=smem, size = 0x4, offset = 0x4, fixed_abs, tag = 'smem constant byte address 0x4 - core index']
  #allocation1 [shape = 'u32[144,128]{1,0:T(1,128)}', space=vmem, size = 0x12000, scoped, tag = 'internal scratch']
  %s0 = inlined_call_operand.vmem [shape: f32[128,128], index: 0, kind: input, shape index: {}]
  %s1 = inlined_call_operand.vmem [shape: f32[128,128], index: 1, kind: input, shape index: {}]
  %s2 = inlined_call_operand.vmem [shape: f32[1,128], index: 2, kind: input, shape index: {}]
  %s3 = inlined_call_operand.vmem [shape: f32[128,128], index: 3, kind: input, shape index: {}]
  %s4 = inlined_call_operand.vmem [shape: f32[1,128], index: 4, kind: input, shape index: {}]
  %s5 = inlined_call_operand.vmem [shape: f32[128,128], index: 5, kind: output, shape index: {0}]
  %s6 = inlined_call_operand.vmem [shape: f32[128,128], index: 6, kind: output, shape index: {1}]
  %7 = xla_tuple %s5, %s6
  %s8 = sld [smem:[#allocation0]]
  $region38: #{sencoder_forward.2} parent=0
    _
  %s10 = ssub.s32 1, %s8
  %s11 = scalar_select 0, %s10, %s8
  // Predicated region
  $region2: #{sencoder_forward.2} parent=0 // pred_check
    _
  $region3: #{sencoder_forward.2} parent=0 // pred_check_branch
    %13 = sbr.rel (0) target = $region5
  $region4: #{sencoder_forward.2} parent=0 // pred_region
    _
  $region5: #{sencoder_forward.2} parent=0 // pred_fallthru
    _
  // Predicated region
  $region6: #{sencoder_forward.2} parent=0 // pred_check
    _
  $region7: #{sencoder_forward.2} parent=0 // pred_check_branch
    %15 = sbr.rel (0) target = $region9
  $region8: #{sencoder_forward.2} parent=0 // pred_region
    _
  $region9: #{sencoder_forward.2} parent=0 // pred_fallthru
    _
  // Predicated region
  $region10: #{sencoder_forward.2} parent=0 // pred_check
    _
  $region11: #{sencoder_forward.2} parent=0 // pred_check_branch
    %17 = sbr.rel (0) target = $region13
  $region12: #{sencoder_forward.2} parent=0 // pred_region
    _
  $region13: #{sencoder_forward.2} parent=0 // pred_fallthru
    _
  // Predicated region
  $region14: #{sencoder_forward.2} parent=0 // pred_check
    _
  $region15: #{sencoder_forward.2} parent=0 // pred_check_branch
    %19 = sbr.rel (0) target = $region17
  $region16: #{sencoder_forward.2} parent=0 // pred_region
    _
  $region17: #{sencoder_forward.2} parent=0 // pred_fallthru
    _
  // Predicated region
  $region18: #{sencoder_forward.2} parent=0 // pred_check
    _
  $region19: #{sencoder_forward.2} parent=0 // pred_check_branch
    %21 = sbr.rel (0) target = $region21
  $region20: #{sencoder_forward.2} parent=0 // pred_region
    _
  $region21: #{sencoder_forward.2} parent=0 // pred_fallthru
    _
  %v22 = vld [vmem:[%s0] sm:$0xff]
  %v23 = vld [vmem:[%s0 + $0x8] sm:$0xff]
  %v24 = vld [vmem:[%s0 + $0x10] sm:$0xff]
  %v25 = vld [vmem:[%s0 + $0x18] sm:$0xff]
  %v26 = vld [vmem:[%s0 + $0x20] sm:$0xff]
  %v27 = vld [vmem:[%s0 + $0x28] sm:$0xff]
  %v28 = vld [vmem:[%s0 + $0x30] sm:$0xff]
  %v29 = vld [vmem:[%s0 + $0x38] sm:$0xff]
  %v30 = vld [vmem:[%s0 + $0x40] sm:$0xff]
  %v31 = vld [vmem:[%s0 + $0x48] sm:$0xff]
  %v32 = vld [vmem:[%s0 + $0x50] sm:$0xff]
  %v33 = vld [vmem:[%s0 + $0x58] sm:$0xff]
  %v34 = vld [vmem:[%s0 + $0x60] sm:$0xff]
  %v35 = vld [vmem:[%s0 + $0x68] sm:$0xff]
  %v36 = vld [vmem:[%s0 + $0x70] sm:$0xff]
  %v37 = vld [vmem:[%s0 + $0x78] sm:$0xff]
  %v38 = vld [vmem:[%s1] sm:$0xff]
  %v39 = vld [vmem:[%s1 + $0x8] sm:$0xff]
  %v40 = vld [vmem:[%s1 + $0x10] sm:$0xff]
  %v41 = vld [vmem:[%s1 + $0x18] sm:$0xff]
  %v42 = vld [vmem:[%s1 + $0x20] sm:$0xff]
  %v43 = vld [vmem:[%s1 + $0x28] sm:$0xff]
  %v44 = vld [vmem:[%s1 + $0x30] sm:$0xff]
  %v45 = vld [vmem:[%s1 + $0x38] sm:$0xff]
  %v46 = vld [vmem:[%s1 + $0x40] sm:$0xff]
  %v47 = vld [vmem:[%s1 + $0x48] sm:$0xff]
  %v48 = vld [vmem:[%s1 + $0x50] sm:$0xff]
  %v49 = vld [vmem:[%s1 + $0x58] sm:$0xff]
  %v50 = vld [vmem:[%s1 + $0x60] sm:$0xff]
  %v51 = vld [vmem:[%s1 + $0x68] sm:$0xff]
  %v52 = vld [vmem:[%s1 + $0x70] sm:$0xff]
  %v53 = vld [vmem:[%s1 + $0x78] sm:$0xff]
  %v54 = vld [vmem:[%s2] sm:$0x1]
  %v56 = vlaneseq
  %v57 = vshrl.u32 %v56, 7
  %v58 = vsub.s32 0, %v57
  %v59 = vrot.slane %v54, %v58
  %61 = vmatprep.subr.mxu0 0.0
  %62 = vmatpush1.msra.mxu0 %v38
  %63 = vmatprep.subr.mxu0 0.0
  %64 = vmatpush1.msra.mxu0 %v39
  %65 = vmatprep.subr.mxu0 0.0
  %66 = vmatpush1.msra.mxu0 %v40
  %67 = vmatprep.subr.mxu0 0.0
  %68 = vmatpush1.msra.mxu0 %v41
  %69 = vmatprep.subr.mxu0 0.0
  %70 = vmatpush1.msra.mxu0 %v42
  %71 = vmatprep.subr.mxu0 0.0
  %72 = vmatpush1.msra.mxu0 %v43
  %73 = vmatprep.subr.mxu0 0.0
  %74 = vmatpush1.msra.mxu0 %v44
  %75 = vmatprep.subr.mxu0 0.0
  %76 = vmatpush1.msra.mxu0 %v45
  %77 = vmatprep.subr.mxu0 0.0
  %78 = vmatpush1.msra.mxu0 %v46
  %79 = vmatprep.subr.mxu0 0.0
  %80 = vmatpush1.msra.mxu0 %v47
  %81 = vmatprep.subr.mxu0 0.0
  %82 = vmatpush1.msra.mxu0 %v48
  %83 = vmatprep.subr.mxu0 0.0
  %84 = vmatpush1.msra.mxu0 %v49
  %85 = vmatprep.subr.mxu0 0.0
  %86 = vmatpush1.msra.mxu0 %v50
  %87 = vmatprep.subr.mxu0 0.0
  %88 = vmatpush1.msra.mxu0 %v51
  %89 = vmatprep.subr.mxu0 0.0
  %90 = vmatpush1.msra.mxu0 %v52
  %91 = vmatprep.subr.mxu0 0.0
  %92 = vmatpush1.msra.mxu0 %v53
  %93 = vmatprep.subr.mxu0 0.0
  %94 = vmatpush1.msra.mxu0 0.0
  %95 = vmatprep.subr.mxu0 0.0
  %96 = vmatpush1.msra.mxu0 0.0
  %97 = vmatprep.subr.mxu0 0.0
  %98 = vmatpush1.msra.mxu0 0.0
  %99 = vmatprep.subr.mxu0 0.0
  %100 = vmatpush1.msra.mxu0 0.0
  %101 = vmatprep.subr.mxu0 0.0
  %102 = vmatpush1.msra.mxu0 0.0
  %103 = vmatprep.subr.mxu0 0.0
  %104 = vmatpush1.msra.mxu0 0.0
  %105 = vmatprep.subr.mxu0 0.0
  %106 = vmatpush1.msra.mxu0 0.0
  %107 = vmatprep.subr.mxu0 0.0
  %108 = vmatpush1.msra.mxu0 0.0
  %109 = vmatprep.subr.mxu0 0.0
  %110 = vmatpush1.msra.mxu0 0.0
  %111 = vmatprep.subr.mxu0 0.0
  %112 = vmatpush1.msra.mxu0 0.0
  %113 = vmatprep.subr.mxu0 0.0
  %114 = vmatpush1.msra.mxu0 0.0
  %115 = vmatprep.subr.mxu0 0.0
  %116 = vmatpush1.msra.mxu0 0.0
  %117 = vmatprep.subr.mxu0 0.0
  %118 = vmatpush1.msra.mxu0 0.0
  %119 = vmatprep.subr.mxu0 0.0
  %120 = vmatpush1.msra.mxu0 0.0
  %121 = vmatprep.subr.mxu0 0.0
  %122 = vmatpush1.msra.mxu0 0.0
  %123 = vmatprep.subr.mxu0 0.0
  %124 = vmatpush1.msra.mxu0 0.0
  %125 = vmatprep.mubr.f32.mxu0 0.0
  %126 = vmatmul.mubr.f32.gmra.mrb[0].mxu0 %v22
  %v127 = vpop.f32.mrb[0].mxu0
  %v128 = vadd.f32 %v59, %v127
  %v129 = vpop.f32.mrb[0].mxu0
  %130 = vmatprep.mubr.f32.mxu0 0.0
  %131 = vmatmul.mubr.f32.gmra.mrb[0].mxu0 %v23
  %v132 = vpop.f32.mrb[0].mxu0
  %v133 = vadd.f32 %v59, %v132
  %v134 = vpop.f32.mrb[0].mxu0
  %135 = vmatprep.mubr.f32.mxu0 0.0
  %136 = vmatmul.mubr.f32.gmra.mrb[0].mxu0 %v24
  %v137 = vpop.f32.mrb[0].mxu0
  %v138 = vadd.f32 %v59, %v137
  %v139 = vpop.f32.mrb[0].mxu0
  %140 = vmatprep.mubr.f32.mxu0 0.0
  %141 = vmatmul.mubr.f32.gmra.mrb[0].mxu0 %v25
  %v142 = vpop.f32.mrb[0].mxu0
  %v143 = vadd.f32 %v59, %v142
  %v144 = vpop.f32.mrb[0].mxu0
  %145 = vmatprep.mubr.f32.mxu0 0.0
  %146 = vmatmul.mubr.f32.gmra.mrb[0].mxu0 %v26
  %v147 = vpop.f32.mrb[0].mxu0
  %v148 = vadd.f32 %v59, %v147
  %v149 = vpop.f32.mrb[0].mxu0
  %150 = vmatprep.mubr.f32.mxu0 0.0
  %151 = vmatmul.mubr.f32.gmra.mrb[0].mxu0 %v27
  %v152 = vpop.f32.mrb[0].mxu0
  %v153 = vadd.f32 %v59, %v152
  %v154 = vpop.f32.mrb[0].mxu0
  %155 = vmatprep.mubr.f32.mxu0 0.0
  %156 = vmatmul.mubr.f32.gmra.mrb[0].mxu0 %v28
  %v157 = vpop.f32.mrb[0].mxu0
  %v158 = vadd.f32 %v59, %v157
  %v159 = vpop.f32.mrb[0].mxu0
  %160 = vmatprep.mubr.f32.mxu0 0.0
  %161 = vmatmul.mubr.f32.gmra.mrb[0].mxu0 %v29
  %v162 = vpop.f32.mrb[0].mxu0
  %v163 = vadd.f32 %v59, %v162
  %v164 = vpop.f32.mrb[0].mxu0
  %165 = vmatprep.mubr.f32.mxu0 0.0
  %166 = vmatmul.mubr.f32.gmra.mrb[0].mxu0 %v30
  %v167 = vpop.f32.mrb[0].mxu0
  %v168 = vadd.f32 %v59, %v167
  %v169 = vpop.f32.mrb[0].mxu0
  %170 = vmatprep.mubr.f32.mxu0 0.0
  %171 = vmatmul.mubr.f32.gmra.mrb[0].mxu0 %v31
  %v172 = vpop.f32.mrb[0].mxu0
  %v173 = vadd.f32 %v59, %v172
  %v174 = vpop.f32.mrb[0].mxu0
  %175 = vmatprep.mubr.f32.mxu0 0.0
  %176 = vmatmul.mubr.f32.gmra.mrb[0].mxu0 %v32
  %v177 = vpop.f32.mrb[0].mxu0
  %v178 = vadd.f32 %v59, %v177
  %v179 = vpop.f32.mrb[0].mxu0
  %180 = vmatprep.mubr.f32.mxu0 0.0
  %181 = vmatmul.mubr.f32.gmra.mrb[0].mxu0 %v33
  %v182 = vpop.f32.mrb[0].mxu0
  %v183 = vadd.f32 %v59, %v182
  %v184 = vpop.f32.mrb[0].mxu0
  %185 = vmatprep.mubr.f32.mxu0 0.0
  %186 = vmatmul.mubr.f32.gmra.mrb[0].mxu0 %v34
  %v187 = vpop.f32.mrb[0].mxu0
  %v188 = vadd.f32 %v59, %v187
  %v189 = vpop.f32.mrb[0].mxu0
  %190 = vmatprep.mubr.f32.mxu0 0.0
  %191 = vmatmul.mubr.f32.gmra.mrb[0].mxu0 %v35
  %v192 = vpop.f32.mrb[0].mxu0
  %v193 = vadd.f32 %v59, %v192
  %v194 = vpop.f32.mrb[0].mxu0
  %195 = vmatprep.mubr.f32.mxu0 0.0
  %196 = vmatmul.mubr.f32.gmra.mrb[0].mxu0 %v36
  %v197 = vpop.f32.mrb[0].mxu0
  %v198 = vadd.f32 %v59, %v197
  %v199 = vpop.f32.mrb[0].mxu0
  %200 = vmatprep.mubr.f32.mxu0 0.0
  %201 = vmatmul.mubr.f32.gmra.mrb[0].mxu0 %v37
  %v202 = vpop.f32.mrb[0].mxu0
  %v203 = vadd.f32 %v59, %v202
  %v204 = vpop.f32.mrb[0].mxu0
  %205 = vdwg.mxu0
  %v206 = vld [vmem:[%s3] sm:$0xff]
  %v207 = vld [vmem:[%s3 + $0x8] sm:$0xff]
  %v208 = vld [vmem:[%s3 + $0x10] sm:$0xff]
  %v209 = vld [vmem:[%s3 + $0x18] sm:$0xff]
  %v210 = vld [vmem:[%s3 + $0x20] sm:$0xff]
  %v211 = vld [vmem:[%s3 + $0x28] sm:$0xff]
  %v212 = vld [vmem:[%s3 + $0x30] sm:$0xff]
  %v213 = vld [vmem:[%s3 + $0x38] sm:$0xff]
  %v214 = vld [vmem:[%s3 + $0x40] sm:$0xff]
  %v215 = vld [vmem:[%s3 + $0x48] sm:$0xff]
  %v216 = vld [vmem:[%s3 + $0x50] sm:$0xff]
  %v217 = vld [vmem:[%s3 + $0x58] sm:$0xff]
  %v218 = vld [vmem:[%s3 + $0x60] sm:$0xff]
  %v219 = vld [vmem:[%s3 + $0x68] sm:$0xff]
  %v220 = vld [vmem:[%s3 + $0x70] sm:$0xff]
  %v221 = vld [vmem:[%s3 + $0x78] sm:$0xff]
  %v222 = vld [vmem:[%s4] sm:$0x1]
  %v224 = vlaneseq
  %v225 = vshrl.u32 %v224, 7
  %v226 = vsub.s32 0, %v225
  %v227 = vrot.slane %v222, %v226
  %229 = vmatprep.subr.mxu0 0.0
  %230 = vmatpush1.msra.mxu0 %v206
  %231 = vmatprep.subr.mxu0 0.0
  %232 = vmatpush1.msra.mxu0 %v207
  %233 = vmatprep.subr.mxu0 0.0
  %234 = vmatpush1.msra.mxu0 %v208
  %235 = vmatprep.subr.mxu0 0.0
  %236 = vmatpush1.msra.mxu0 %v209
  %237 = vmatprep.subr.mxu0 0.0
  %238 = vmatpush1.msra.mxu0 %v210
  %239 = vmatprep.subr.mxu0 0.0
  %240 = vmatpush1.msra.mxu0 %v211
  %241 = vmatprep.subr.mxu0 0.0
  %242 = vmatpush1.msra.mxu0 %v212
  %243 = vmatprep.subr.mxu0 0.0
  %244 = vmatpush1.msra.mxu0 %v213
  %245 = vmatprep.subr.mxu0 0.0
  %246 = vmatpush1.msra.mxu0 %v214
  %247 = vmatprep.subr.mxu0 0.0
  %248 = vmatpush1.msra.mxu0 %v215
  %249 = vmatprep.subr.mxu0 0.0
  %250 = vmatpush1.msra.mxu0 %v216
  %251 = vmatprep.subr.mxu0 0.0
  %252 = vmatpush1.msra.mxu0 %v217
  %253 = vmatprep.subr.mxu0 0.0
  %254 = vmatpush1.msra.mxu0 %v218
  %255 = vmatprep.subr.mxu0 0.0
  %256 = vmatpush1.msra.mxu0 %v219
  %257 = vmatprep.subr.mxu0 0.0
  %258 = vmatpush1.msra.mxu0 %v220
  %259 = vmatprep.subr.mxu0 0.0
  %260 = vmatpush1.msra.mxu0 %v221
  %261 = vmatprep.subr.mxu0 0.0
  %262 = vmatpush1.msra.mxu0 0.0
  %263 = vmatprep.subr.mxu0 0.0
  %264 = vmatpush1.msra.mxu0 0.0
  %265 = vmatprep.subr.mxu0 0.0
  %266 = vmatpush1.msra.mxu0 0.0
  %267 = vmatprep.subr.mxu0 0.0
  %268 = vmatpush1.msra.mxu0 0.0
  %269 = vmatprep.subr.mxu0 0.0
  %270 = vmatpush1.msra.mxu0 0.0
  %271 = vmatprep.subr.mxu0 0.0
  %272 = vmatpush1.msra.mxu0 0.0
  %273 = vmatprep.subr.mxu0 0.0
  %274 = vmatpush1.msra.mxu0 0.0
  %275 = vmatprep.subr.mxu0 0.0
  %276 = vmatpush1.msra.mxu0 0.0
  %277 = vmatprep.subr.mxu0 0.0
  %278 = vmatpush1.msra.mxu0 0.0
  %279 = vmatprep.subr.mxu0 0.0
  %280 = vmatpush1.msra.mxu0 0.0
  %281 = vmatprep.subr.mxu0 0.0
  %282 = vmatpush1.msra.mxu0 0.0
  %283 = vmatprep.subr.mxu0 0.0
  %284 = vmatpush1.msra.mxu0 0.0
  %285 = vmatprep.subr.mxu0 0.0
  %286 = vmatpush1.msra.mxu0 0.0
  %287 = vmatprep.subr.mxu0 0.0
  %288 = vmatpush1.msra.mxu0 0.0
  %289 = vmatprep.subr.mxu0 0.0
  %290 = vmatpush1.msra.mxu0 0.0
  %291 = vmatprep.subr.mxu0 0.0
  %292 = vmatpush1.msra.mxu0 0.0
  %293 = vmatprep.mubr.f32.mxu0 0.0
  %294 = vmatmul.mubr.f32.gmra.mrb[0].mxu0 %v128
  %v295 = vpop.f32.mrb[0].mxu0
  %v296 = vadd.f32 %v227, %v295
  %v297 = vpop.f32.mrb[0].mxu0
  %298 = vmatprep.mubr.f32.mxu0 0.0
  %299 = vmatmul.mubr.f32.gmra.mrb[0].mxu0 %v133
  %v300 = vpop.f32.mrb[0].mxu0
  %v301 = vadd.f32 %v227, %v300
  %v302 = vpop.f32.mrb[0].mxu0
  %303 = vmatprep.mubr.f32.mxu0 0.0
  %304 = vmatmul.mubr.f32.gmra.mrb[0].mxu0 %v138
  %v305 = vpop.f32.mrb[0].mxu0
  %v306 = vadd.f32 %v227, %v305
  %v307 = vpop.f32.mrb[0].mxu0
  %308 = vmatprep.mubr.f32.mxu0 0.0
  %309 = vmatmul.mubr.f32.gmra.mrb[0].mxu0 %v143
  %v310 = vpop.f32.mrb[0].mxu0
  %v311 = vadd.f32 %v227, %v310
  %v312 = vpop.f32.mrb[0].mxu0
  %313 = vmatprep.mubr.f32.mxu0 0.0
  %314 = vmatmul.mubr.f32.gmra.mrb[0].mxu0 %v148
  %v315 = vpop.f32.mrb[0].mxu0
  %v316 = vadd.f32 %v227, %v315
  %v317 = vpop.f32.mrb[0].mxu0
  %318 = vmatprep.mubr.f32.mxu0 0.0
  %319 = vmatmul.mubr.f32.gmra.mrb[0].mxu0 %v153
  %v320 = vpop.f32.mrb[0].mxu0
  %v321 = vadd.f32 %v227, %v320
  %v322 = vpop.f32.mrb[0].mxu0
  %323 = vmatprep.mubr.f32.mxu0 0.0
  %324 = vmatmul.mubr.f32.gmra.mrb[0].mxu0 %v158
  %v325 = vpop.f32.mrb[0].mxu0
  %v326 = vadd.f32 %v227, %v325
  %v327 = vpop.f32.mrb[0].mxu0
  %328 = vmatprep.mubr.f32.mxu0 0.0
  %329 = vmatmul.mubr.f32.gmra.mrb[0].mxu0 %v163
  %v330 = vpop.f32.mrb[0].mxu0
  %v331 = vadd.f32 %v227, %v330
  %v332 = vpop.f32.mrb[0].mxu0
  %333 = vmatprep.mubr.f32.mxu0 0.0
  %334 = vmatmul.mubr.f32.gmra.mrb[0].mxu0 %v168
  %v335 = vpop.f32.mrb[0].mxu0
  %v336 = vadd.f32 %v227, %v335
  %v337 = vpop.f32.mrb[0].mxu0
  %338 = vmatprep.mubr.f32.mxu0 0.0
  %339 = vmatmul.mubr.f32.gmra.mrb[0].mxu0 %v173
  %v340 = vpop.f32.mrb[0].mxu0
  %v341 = vadd.f32 %v227, %v340
  %v342 = vpop.f32.mrb[0].mxu0
  %343 = vmatprep.mubr.f32.mxu0 0.0
  %344 = vmatmul.mubr.f32.gmra.mrb[0].mxu0 %v178
  %v345 = vpop.f32.mrb[0].mxu0
  %v346 = vadd.f32 %v227, %v345
  %v347 = vpop.f32.mrb[0].mxu0
  %348 = vmatprep.mubr.f32.mxu0 0.0
  %349 = vmatmul.mubr.f32.gmra.mrb[0].mxu0 %v183
  %v350 = vpop.f32.mrb[0].mxu0
  %v351 = vadd.f32 %v227, %v350
  %v352 = vpop.f32.mrb[0].mxu0
  %353 = vmatprep.mubr.f32.mxu0 0.0
  %354 = vmatmul.mubr.f32.gmra.mrb[0].mxu0 %v188
  %v355 = vpop.f32.mrb[0].mxu0
  %v356 = vadd.f32 %v227, %v355
  %v357 = vpop.f32.mrb[0].mxu0
  %358 = vmatprep.mubr.f32.mxu0 0.0
  %359 = vmatmul.mubr.f32.gmra.mrb[0].mxu0 %v193
  %v360 = vpop.f32.mrb[0].mxu0
  %v361 = vadd.f32 %v227, %v360
  %v362 = vpop.f32.mrb[0].mxu0
  %363 = vmatprep.mubr.f32.mxu0 0.0
  %364 = vmatmul.mubr.f32.gmra.mrb[0].mxu0 %v198
  %v365 = vpop.f32.mrb[0].mxu0
  %v366 = vadd.f32 %v227, %v365
  %v367 = vpop.f32.mrb[0].mxu0
  %368 = vmatprep.mubr.f32.mxu0 0.0
  %369 = vmatmul.mubr.f32.gmra.mrb[0].mxu0 %v203
  %v370 = vpop.f32.mrb[0].mxu0
  %v371 = vadd.f32 %v227, %v370
  %v372 = vpop.f32.mrb[0].mxu0
  %373 = vdwg.mxu0
  %v374 = vmul.f32 %v296, %v296
  %v375 = vmul.f32 %v301, %v301
  %v376 = vmul.f32 %v306, %v306
  %v377 = vmul.f32 %v311, %v311
  %v378 = vmul.f32 %v316, %v316
  %v379 = vmul.f32 %v321, %v321
  %v380 = vmul.f32 %v326, %v326
  %v381 = vmul.f32 %v331, %v331
  %v382 = vmul.f32 %v336, %v336
  %v383 = vmul.f32 %v341, %v341
  %v384 = vmul.f32 %v346, %v346
  %v385 = vmul.f32 %v351, %v351
  %v386 = vmul.f32 %v356, %v356
  %v387 = vmul.f32 %v361, %v361
  %v388 = vmul.f32 %v366, %v366
  %v389 = vmul.f32 %v371, %v371
  %390 = vadd.xlane.f32.xlu0 %v374
  %v391 = vpop.xlane.xlu0 %390
  %392 = vadd.xlane.f32.xlu0 %v375
  %v393 = vpop.xlane.xlu0 %392
  %394 = vadd.xlane.f32.xlu0 %v376
  %v395 = vpop.xlane.xlu0 %394
  %396 = vadd.xlane.f32.xlu0 %v377
  %v397 = vpop.xlane.xlu0 %396
  %398 = vadd.xlane.f32.xlu0 %v378
  %v399 = vpop.xlane.xlu0 %398
  %400 = vadd.xlane.f32.xlu0 %v379
  %v401 = vpop.xlane.xlu0 %400
  %402 = vadd.xlane.f32.xlu0 %v380
  %v403 = vpop.xlane.xlu0 %402
  %404 = vadd.xlane.f32.xlu0 %v381
  %v405 = vpop.xlane.xlu0 %404
  %406 = vadd.xlane.f32.xlu0 %v382
  %v407 = vpop.xlane.xlu0 %406
  %408 = vadd.xlane.f32.xlu0 %v383
  %v409 = vpop.xlane.xlu0 %408
  %410 = vadd.xlane.f32.xlu0 %v384
  %v411 = vpop.xlane.xlu0 %410
  %412 = vadd.xlane.f32.xlu0 %v385
  %v413 = vpop.xlane.xlu0 %412
  %414 = vadd.xlane.f32.xlu0 %v386
  %v415 = vpop.xlane.xlu0 %414
  %416 = vadd.xlane.f32.xlu0 %v387
  %v417 = vpop.xlane.xlu0 %416
  %418 = vadd.xlane.f32.xlu0 %v388
  %v419 = vpop.xlane.xlu0 %418
  %420 = vadd.xlane.f32.xlu0 %v389
  %v421 = vpop.xlane.xlu0 %420
  %v422 = vrsqrt.pop %v391
  %v423 = vmul.f32 %v391, %v422
  %vm424 = vcmp.eq.f32.partialorder %v391, inf
  %v425 = vsel %vm424, %v391, %v423
  %vm426 = vcmp.eq.f32.partialorder %v391, 0.0
  %v427 = vand.u32 %v391, 2147483648
  %v428 = vsel %vm426, %v427, %v425
  %v429 = vrsqrt.pop %v393
  %v430 = vmul.f32 %v393, %v429
  %vm431 = vcmp.eq.f32.partialorder %v393, inf
  %v432 = vsel %vm431, %v393, %v430
  %vm433 = vcmp.eq.f32.partialorder %v393, 0.0
  %v434 = vand.u32 %v393, 2147483648
  %v435 = vsel %vm433, %v434, %v432
  %v436 = vrsqrt.pop %v395
  %v437 = vmul.f32 %v395, %v436
  %vm438 = vcmp.eq.f32.partialorder %v395, inf
  %v439 = vsel %vm438, %v395, %v437
  %vm440 = vcmp.eq.f32.partialorder %v395, 0.0
  %v441 = vand.u32 %v395, 2147483648
  %v442 = vsel %vm440, %v441, %v439
  %v443 = vrsqrt.pop %v397
  %v444 = vmul.f32 %v397, %v443
  %vm445 = vcmp.eq.f32.partialorder %v397, inf
  %v446 = vsel %vm445, %v397, %v444
  %vm447 = vcmp.eq.f32.partialorder %v397, 0.0
  %v448 = vand.u32 %v397, 2147483648
  %v449 = vsel %vm447, %v448, %v446
  %v450 = vrsqrt.pop %v399
  %v451 = vmul.f32 %v399, %v450
  %vm452 = vcmp.eq.f32.partialorder %v399, inf
  %v453 = vsel %vm452, %v399, %v451
  %vm454 = vcmp.eq.f32.partialorder %v399, 0.0
  %v455 = vand.u32 %v399, 2147483648
  %v456 = vsel %vm454, %v455, %v453
  %v457 = vrsqrt.pop %v401
  %v458 = vmul.f32 %v401, %v457
  %vm459 = vcmp.eq.f32.partialorder %v401, inf
  %v460 = vsel %vm459, %v401, %v458
  %vm461 = vcmp.eq.f32.partialorder %v401, 0.0
  %v462 = vand.u32 %v401, 2147483648
  %v463 = vsel %vm461, %v462, %v460
  %v464 = vrsqrt.pop %v403
  %v465 = vmul.f32 %v403, %v464
  %vm466 = vcmp.eq.f32.partialorder %v403, inf
  %v467 = vsel %vm466, %v403, %v465
  %vm468 = vcmp.eq.f32.partialorder %v403, 0.0
  %v469 = vand.u32 %v403, 2147483648
  %v470 = vsel %vm468, %v469, %v467
  %v471 = vrsqrt.pop %v405
  %v472 = vmul.f32 %v405, %v471
  %vm473 = vcmp.eq.f32.partialorder %v405, inf
  %v474 = vsel %vm473, %v405, %v472
  %vm475 = vcmp.eq.f32.partialorder %v405, 0.0
  %v476 = vand.u32 %v405, 2147483648
  %v477 = vsel %vm475, %v476, %v474
  %v478 = vrsqrt.pop %v407
  %v479 = vmul.f32 %v407, %v478
  %vm480 = vcmp.eq.f32.partialorder %v407, inf
  %v481 = vsel %vm480, %v407, %v479
  %vm482 = vcmp.eq.f32.partialorder %v407, 0.0
  %v483 = vand.u32 %v407, 2147483648
  %v484 = vsel %vm482, %v483, %v481
  %v485 = vrsqrt.pop %v409
  %v486 = vmul.f32 %v409, %v485
  %vm487 = vcmp.eq.f32.partialorder %v409, inf
  %v488 = vsel %vm487, %v409, %v486
  %vm489 = vcmp.eq.f32.partialorder %v409, 0.0
  %v490 = vand.u32 %v409, 2147483648
  %v491 = vsel %vm489, %v490, %v488
  %v492 = vrsqrt.pop %v411
  %v493 = vmul.f32 %v411, %v492
  %vm494 = vcmp.eq.f32.partialorder %v411, inf
  %v495 = vsel %vm494, %v411, %v493
  %vm496 = vcmp.eq.f32.partialorder %v411, 0.0
  %v497 = vand.u32 %v411, 2147483648
  %v498 = vsel %vm496, %v497, %v495
  %v499 = vrsqrt.pop %v413
  %v500 = vmul.f32 %v413, %v499
  %vm501 = vcmp.eq.f32.partialorder %v413, inf
  %v502 = vsel %vm501, %v413, %v500
  %vm503 = vcmp.eq.f32.partialorder %v413, 0.0
  %v504 = vand.u32 %v413, 2147483648
  %v505 = vsel %vm503, %v504, %v502
  %v506 = vrsqrt.pop %v415
  %v507 = vmul.f32 %v415, %v506
  %vm508 = vcmp.eq.f32.partialorder %v415, inf
  %v509 = vsel %vm508, %v415, %v507
  %vm510 = vcmp.eq.f32.partialorder %v415, 0.0
  %v511 = vand.u32 %v415, 2147483648
  %v512 = vsel %vm510, %v511, %v509
  %v513 = vrsqrt.pop %v417
  %v514 = vmul.f32 %v417, %v513
  %vm515 = vcmp.eq.f32.partialorder %v417, inf
  %v516 = vsel %vm515, %v417, %v514
  %vm517 = vcmp.eq.f32.partialorder %v417, 0.0
  %v518 = vand.u32 %v417, 2147483648
  %v519 = vsel %vm517, %v518, %v516
  %v520 = vrsqrt.pop %v419
  %v521 = vmul.f32 %v419, %v520
  %vm522 = vcmp.eq.f32.partialorder %v419, inf
  %v523 = vsel %vm522, %v419, %v521
  %vm524 = vcmp.eq.f32.partialorder %v419, 0.0
  %v525 = vand.u32 %v419, 2147483648
  %v526 = vsel %vm524, %v525, %v523
  %v527 = vrsqrt.pop %v421
  %v528 = vmul.f32 %v421, %v527
  %vm529 = vcmp.eq.f32.partialorder %v421, inf
  %v530 = vsel %vm529, %v421, %v528
  %vm531 = vcmp.eq.f32.partialorder %v421, 0.0
  %v532 = vand.u32 %v421, 2147483648
  %v533 = vsel %vm531, %v532, %v530
  %v534 = vadd.f32 %v428, 1e-08
  %v535 = vadd.f32 %v435, 1e-08
  %v536 = vadd.f32 %v442, 1e-08
  %v537 = vadd.f32 %v449, 1e-08
  %v538 = vadd.f32 %v456, 1e-08
  %v539 = vadd.f32 %v463, 1e-08
  %v540 = vadd.f32 %v470, 1e-08
  %v541 = vadd.f32 %v477, 1e-08
  %v542 = vadd.f32 %v484, 1e-08
  %v543 = vadd.f32 %v491, 1e-08
  %v544 = vadd.f32 %v498, 1e-08
  %v545 = vadd.f32 %v505, 1e-08
  %v546 = vadd.f32 %v512, 1e-08
  %v547 = vadd.f32 %v519, 1e-08
  %v548 = vadd.f32 %v526, 1e-08
  %v549 = vadd.f32 %v533, 1e-08
  %v550 = vrcp.pop %v534
  %v551 = vmul.f32 1.0, %v550
  %v552 = vrcp.pop %v535
  %v553 = vmul.f32 1.0, %v552
  %v554 = vrcp.pop %v536
  %v555 = vmul.f32 1.0, %v554
  %v556 = vrcp.pop %v537
  %v557 = vmul.f32 1.0, %v556
  %v558 = vrcp.pop %v538
  %v559 = vmul.f32 1.0, %v558
  %v560 = vrcp.pop %v539
  %v561 = vmul.f32 1.0, %v560
  %v562 = vrcp.pop %v540
  %v563 = vmul.f32 1.0, %v562
  %v564 = vrcp.pop %v541
  %v565 = vmul.f32 1.0, %v564
  %v566 = vrcp.pop %v542
  %v567 = vmul.f32 1.0, %v566
  %v568 = vrcp.pop %v543
  %v569 = vmul.f32 1.0, %v568
  %v570 = vrcp.pop %v544
  %v571 = vmul.f32 1.0, %v570
  %v572 = vrcp.pop %v545
  %v573 = vmul.f32 1.0, %v572
  %v574 = vrcp.pop %v546
  %v575 = vmul.f32 1.0, %v574
  %v576 = vrcp.pop %v547
  %v577 = vmul.f32 1.0, %v576
  %v578 = vrcp.pop %v548
  %v579 = vmul.f32 1.0, %v578
  %v580 = vrcp.pop %v549
  %v581 = vmul.f32 1.0, %v580
  %582 = vst [vmem:[%s5] sm:$0xff] %v296
  %583 = vst [vmem:[%s5 + $0x8] sm:$0xff] %v301
  %584 = vst [vmem:[%s5 + $0x10] sm:$0xff] %v306
  %585 = vst [vmem:[%s5 + $0x18] sm:$0xff] %v311
  %586 = vst [vmem:[%s5 + $0x20] sm:$0xff] %v316
  %587 = vst [vmem:[%s5 + $0x28] sm:$0xff] %v321
  %588 = vst [vmem:[%s5 + $0x30] sm:$0xff] %v326
  %589 = vst [vmem:[%s5 + $0x38] sm:$0xff] %v331
  %590 = vst [vmem:[%s5 + $0x40] sm:$0xff] %v336
  %591 = vst [vmem:[%s5 + $0x48] sm:$0xff] %v341
  %592 = vst [vmem:[%s5 + $0x50] sm:$0xff] %v346
  %593 = vst [vmem:[%s5 + $0x58] sm:$0xff] %v351
  %594 = vst [vmem:[%s5 + $0x60] sm:$0xff] %v356
  %595 = vst [vmem:[%s5 + $0x68] sm:$0xff] %v361
  %596 = vst [vmem:[%s5 + $0x70] sm:$0xff] %v366
  %597 = vst [vmem:[%s5 + $0x78] sm:$0xff] %v371
  %v598 = vmul.f32 %v296, %v551
  %v599 = vmul.f32 %v301, %v553
  %v600 = vmul.f32 %v306, %v555
  %v601 = vmul.f32 %v311, %v557
  %v602 = vmul.f32 %v316, %v559
  %v603 = vmul.f32 %v321, %v561
  %v604 = vmul.f32 %v326, %v563
  %v605 = vmul.f32 %v331, %v565
  %v606 = vmul.f32 %v336, %v567
  %v607 = vmul.f32 %v341, %v569
  %v608 = vmul.f32 %v346, %v571
  %v609 = vmul.f32 %v351, %v573
  %v610 = vmul.f32 %v356, %v575
  %v611 = vmul.f32 %v361, %v577
  %v612 = vmul.f32 %v366, %v579
  %v613 = vmul.f32 %v371, %v581
  %614 = vst [vmem:[%s6] sm:$0xff] %v598
  %615 = vst [vmem:[%s6 + $0x8] sm:$0xff] %v599
  %616 = vst [vmem:[%s6 + $0x10] sm:$0xff] %v600
  %617 = vst [vmem:[%s6 + $0x18] sm:$0xff] %v601
  %618 = vst [vmem:[%s6 + $0x20] sm:$0xff] %v602
  %619 = vst [vmem:[%s6 + $0x28] sm:$0xff] %v603
  %620 = vst [vmem:[%s6 + $0x30] sm:$0xff] %v604
  %621 = vst [vmem:[%s6 + $0x38] sm:$0xff] %v605
  %622 = vst [vmem:[%s6 + $0x40] sm:$0xff] %v606
  %623 = vst [vmem:[%s6 + $0x48] sm:$0xff] %v607
  %624 = vst [vmem:[%s6 + $0x50] sm:$0xff] %v608
  %625 = vst [vmem:[%s6 + $0x58] sm:$0xff] %v609
  %626 = vst [vmem:[%s6 + $0x60] sm:$0xff] %v610
  %627 = vst [vmem:[%s6 + $0x68] sm:$0xff] %v611
  %628 = vst [vmem:[%s6 + $0x70] sm:$0xff] %v612
  %629 = vst [vmem:[%s6 + $0x78] sm:$0xff] %v613
  // Predicated region
  $region22: #{sencoder_forward.2} parent=0 // pred_check
    _
  $region23: #{sencoder_forward.2} parent=0 // pred_check_branch
    %631 = sbr.rel (0) target = $region25
  $region24: #{sencoder_forward.2} parent=0 // pred_region
    _
  $region25: #{sencoder_forward.2} parent=0 // pred_fallthru
    _
  // Predicated region
  $region26: #{sencoder_forward.2} parent=0 // pred_check
    _
  $region27: #{sencoder_forward.2} parent=0 // pred_check_branch
    %633 = sbr.rel (0) target = $region29
  $region28: #{sencoder_forward.2} parent=0 // pred_region
    _
  $region29: #{sencoder_forward.2} parent=0 // pred_fallthru
    _
  // Predicated region
  $region30: #{sencoder_forward.2} parent=0 // pred_check
    _
  $region31: #{sencoder_forward.2} parent=0 // pred_check_branch
    %635 = sbr.rel (0) target = $region33
  $region32: #{sencoder_forward.2} parent=0 // pred_region
    _
  $region33: #{sencoder_forward.2} parent=0 // pred_fallthru
    _
  // Predicated region
  $region34: #{sencoder_forward.2} parent=0 // pred_check
    _
  $region35: #{sencoder_forward.2} parent=0 // pred_check_branch
    %637 = sbr.rel (0) target = $region37
  $region36: #{sencoder_forward.2} parent=0 // pred_region
    _
  $region37: #{sencoder_forward.2} parent=0 // pred_fallthru
    _

</llo_original>
